<compile_context>
chip_gen: v6e
topology: v6e:2x2x1
jax: 0.10.0
libtpu: 0.0.40
codegen_flags: <defaults>
</compile_context>

<pallas_src>
import functools

import jax
import jax.numpy as jnp
from jax.experimental import pallas as pl
from jax.experimental.pallas import tpu as pltpu


def _round_up(v, m):
    return ((v + m - 1) // m) * m


def _vmem_capacity_bytes():
    try:
        return int(pltpu.get_tpu_info().vmem_capacity_bytes)
    except Exception:
        return 64 << 20  # conservative fallback (v7x per-TensorCore VMEM)


# ---------------------------------------------------------------------------
# Kernels
# ---------------------------------------------------------------------------
def _gated_dense_kernel_fullk(x_ref, wh_ref, wg_ref, bh_ref, bg_ref, o_ref,
                              *, activation):
    """2-D grid (batch tile i, output tile j): whole reduction in one shot."""
    x = x_ref[...]
    h = jnp.dot(x, wh_ref[...], preferred_element_type=jnp.float32) + bh_ref[...]
    g = jnp.dot(x, wg_ref[...], preferred_element_type=jnp.float32) + bg_ref[...]
    if activation is not None:
        h = activation(h)
    o_ref[...] = (h * jax.nn.sigmoid(g)).astype(o_ref.dtype)


def _gated_dense_kernel_ksplit(x_ref, wh_ref, wg_ref, bh_ref, bg_ref, o_ref,
                               acc_h, acc_g, *, activation):
    """3-D grid (i, j, k), k (reduction) innermost; f32 VMEM accumulators."""
    k = pl.program_id(2)

    @pl.when(k == 0)
    def _init():
        acc_h[...] = jnp.zeros_like(acc_h)
        acc_g[...] = jnp.zeros_like(acc_g)

    x = x_ref[...]
    acc_h[...] += jnp.dot(x, wh_ref[...], preferred_element_type=jnp.float32)
    acc_g[...] += jnp.dot(x, wg_ref[...], preferred_element_type=jnp.float32)

    @pl.when(k == pl.num_programs(2) - 1)
    def _finalize():
        h = acc_h[...] + bh_ref[...]
        g = acc_g[...] + bg_ref[...]
        if activation is not None:
            h = activation(h)
        o_ref[...] = (h * jax.nn.sigmoid(g)).astype(o_ref.dtype)


# ---------------------------------------------------------------------------
# Wrapper
# ---------------------------------------------------------------------------
def gated_dense(x, w_h, b_h, w_g, b_g, *, activation=None,
                block_b=None, block_n=None, block_k=None,
                compute_dtype=jnp.bfloat16):
    """x: (B, D_in); w_*: (D_in, D_out); b_*: (D_out,). Returns (B, D_out).

    `activation` (applied to h) must be elementwise & Pallas-lowerable.
    For production use, cast/pad weights to `compute_dtype` once at model init
    and pass them through; here the (cheap) cast/pad happens per call.
    """
    B, D_in = x.shape
    D_out = w_h.shape[1]
    out_dtype = x.dtype
    cdt = jnp.dtype(compute_dtype)
    itm = cdt.itemsize
    out_itm = jnp.dtype(out_dtype).itemsize
    sublane = 16 if itm == 2 else 8

    N128 = _round_up(D_out, 128)
    K128 = _round_up(D_in, 128)
    Bsub = _round_up(B, sublane)

    cap = _vmem_capacity_bytes()
    budget = int(0.70 * cap)            # tile-plan budget (pipeline headroom)

    # ---- default tiles: as big as problem / VMEM allow ----------------------
    block_n = min(N128, 512) if block_n is None else min(_round_up(block_n, 128), N128)
    block_k = min(K128, 2048) if block_k is None else min(_round_up(block_k, 128), K128)
    block_b = min(Bsub, 512) if block_b is None else min(_round_up(block_b, sublane), Bsub)

    def _need(bb, bn, bk):
        ksplit = bk < K128
        need = 2 * bb * bk * itm            # x (double-buffered)
        need += 2 * 2 * bk * bn * itm       # w_h + w_g (double-buffered)
        need += 2 * 2 * bn * 4              # biases (f32)
        need += 2 * bb * bn * out_itm       # output tile
        if ksplit:
            need += 2 * bb * bn * 4         # acc_h + acc_g scratch (f32)
        return need

    # ---- shrink until working set fits (k first, then n, then b) ------------
    while _need(block_b, block_n, block_k) > budget:
        if block_k > 512:
            block_k = max(512, _round_up(block_k // 2, 128))
        elif block_n > 128:
            block_n = max(128, _round_up(block_n // 2, 128))
        elif block_b > sublane:
            block_b = max(sublane, _round_up(block_b // 2, sublane))
        elif block_k > 128:
            block_k = max(128, _round_up(block_k // 2, 128))
        else:
            break

    # ---- v7x megacore: expose >= 2 parallel (i, j) tiles when possible ------
    if pl.cdiv(Bsub, block_b) * pl.cdiv(N128, block_n) < 2:
        if block_n >= 256:
            block_n = _round_up(N128 // 2, 128)
        elif block_b >= 2 * sublane:
            block_b = _round_up(Bsub // 2, sublane)

    n_i = pl.cdiv(Bsub, block_b)
    n_j = pl.cdiv(N128, block_n)
    n_k = pl.cdiv(K128, block_k)
    B_p, N_p, K_p = n_i * block_b, n_j * block_n, n_k * block_k

    # ---- pad / cast operands (zero padding keeps results exact) -------------
    x_p = x.astype(cdt)
    if (B_p, K_p) != (B, D_in):
        x_p = jnp.pad(x_p, ((0, B_p - B), (0, K_p - D_in)))

    def _pad_w(w):
        w = w.astype(cdt)
        if (K_p, N_p) != (D_in, D_out):
            w = jnp.pad(w, ((0, K_p - D_in), (0, N_p - D_out)))
        return w

    def _pad_b(b):
        b = b.astype(jnp.float32)
        if N_p != D_out:
            b = jnp.pad(b, (0, N_p - D_out))
        return b.reshape(1, N_p)

    wh_p, wg_p = _pad_w(w_h), _pad_w(w_g)
    bh_p, bg_p = _pad_b(b_h), _pad_b(b_g)

    # ---- cost estimate (honest re-streaming counts) --------------------------
    x_restream = 1 if n_k == 1 else n_j
    cost = pl.CostEstimate(
        flops=2 * 2 * B * D_in * D_out,
        transcendentals=B * D_out,
        bytes_accessed=(x_restream * B_p * K_p * itm
                        + n_i * 2 * K_p * N_p * itm
                        + 2 * N_p * 4
                        + B_p * N_p * out_itm),
    )
    vmem_limit = max(32 << 20, min(int(0.85 * cap), cap - (2 << 20)))

    # ---- grid / specs ---------------------------------------------------------
    if n_k == 1:
        grid = (n_i, n_j)
        in_specs = [
            pl.BlockSpec((block_b, block_k), lambda i, j: (i, 0)),   # x (reused over j)
            pl.BlockSpec((block_k, block_n), lambda i, j: (0, j)),   # w_h
            pl.BlockSpec((block_k, block_n), lambda i, j: (0, j)),   # w_g
            pl.BlockSpec((1, block_n), lambda i, j: (0, j)),         # b_h
            pl.BlockSpec((1, block_n), lambda i, j: (0, j)),         # b_g
        ]
        out_specs = pl.BlockSpec((block_b, block_n), lambda i, j: (i, j))
        scratch_shapes = []
        dims = ("parallel", "parallel")
        kernel = functools.partial(_gated_dense_kernel_fullk, activation=activation)
    else:
        grid = (n_i, n_j, n_k)                                       # reduction last
        in_specs = [
            pl.BlockSpec((block_b, block_k), lambda i, j, k: (i, k)),
            pl.BlockSpec((block_k, block_n), lambda i, j, k: (k, j)),
            pl.BlockSpec((block_k, block_n), lambda i, j, k: (k, j)),
            pl.BlockSpec((1, block_n), lambda i, j, k: (0, j)),
            pl.BlockSpec((1, block_n), lambda i, j, k: (0, j)),
        ]
        out_specs = pl.BlockSpec((block_b, block_n), lambda i, j, k: (i, j))
        scratch_shapes = [pltpu.VMEM((block_b, block_n), jnp.float32),
                          pltpu.VMEM((block_b, block_n), jnp.float32)]
        dims = ("parallel", "parallel", "arbitrary")
        kernel = functools.partial(_gated_dense_kernel_ksplit, activation=activation)

    out_p = pl.pallas_call(
        kernel,
        out_shape=jax.ShapeDtypeStruct((B_p, N_p), out_dtype),
        grid_spec=pltpu.PrefetchScalarGridSpec(
            num_scalar_prefetch=0,
            grid=grid,
            in_specs=in_specs,
            out_specs=out_specs,
            scratch_shapes=scratch_shapes,
        ),
        compiler_params=pltpu.CompilerParams(
            dimension_semantics=dims,
            vmem_limit_bytes=vmem_limit,
        ),
        cost_estimate=cost,
    )(x_p, wh_p, wg_p, bh_p, bg_p)

    if (B_p, N_p) != (B, D_out):
        out_p = out_p[:B, :D_out]
    return out_p


def _init_linear_params(key, in_features, out_features, dtype=jnp.float32):
    """Deterministic PyTorch-style nn.Linear init: U(-1/sqrt(in), 1/sqrt(in))."""
    kw, kb = jax.random.split(key)
    bound = 1.0 / jnp.sqrt(jnp.float32(in_features))
    # stored as (in, out) == transpose of PyTorch's (out, in)
    w = jax.random.uniform(kw, (in_features, out_features), dtype, -bound, bound)
    b = jax.random.uniform(kb, (out_features,), dtype, -bound, bound)
    return w, b


if __name__ == "__main__":
    key = jax.random.PRNGKey(0)
    k_x, k_h, k_g, k_x2, k_h2, k_g2 = jax.random.split(key, 6)

    # Small shapes consistent with GatedDense(input_size=64, output_size=32), batch 8.
    batch, input_size, output_size = 8, 64, 32
    x = jax.random.normal(k_x, (batch, input_size), jnp.float32)
    w_h, b_h = _init_linear_params(k_h, input_size, output_size)
    w_g, b_g = _init_linear_params(k_g, input_size, output_size)
    ref = (x @ w_h + b_h) * jax.nn.sigmoid(x @ w_g + b_g)

    # Default bf16-compute path (f32 accumulation inside the kernel).
    out = jax.block_until_ready(gated_dense(x, w_h, b_h, w_g, b_g))
    assert out.shape == (batch, output_size)
    assert jnp.allclose(out, ref, atol=5e-2, rtol=5e-2)

    # Explicit f32-compute path.
    out_f32 = jax.block_until_ready(
        gated_dense(x, w_h, b_h, w_g, b_g, compute_dtype=jnp.float32))
    assert jnp.allclose(out_f32, ref, atol=1e-3, rtol=1e-3)

    # Optional elementwise activation on h (matches `activation(self.h(x))`).
    ref_act = jax.nn.relu(x @ w_h + b_h) * jax.nn.sigmoid(x @ w_g + b_g)
    out_act = jax.block_until_ready(
        gated_dense(x, w_h, b_h, w_g, b_g, activation=jax.nn.relu,
                    compute_dtype=jnp.float32))
    assert jnp.allclose(out_act, ref_act, atol=1e-3, rtol=1e-3)

    # Exercise the k-split (3-D grid) path + ragged padding in N.
    b2, din2, dout2 = 16, 256, 160
    x2 = jax.random.normal(k_x2, (b2, din2), jnp.float32)
    w_h2, b_h2 = _init_linear_params(k_h2, din2, dout2)
    w_g2, b_g2 = _init_linear_params(k_g2, din2, dout2)
    ref2 = (x2 @ w_h2 + b_h2) * jax.nn.sigmoid(x2 @ w_g2 + b_g2)
    out2 = jax.block_until_ready(
        gated_dense(x2, w_h2, b_h2, w_g2, b_g2, compute_dtype=jnp.float32,
                    block_k=128, block_n=128))
    assert out2.shape == (b2, dout2)
    assert jnp.allclose(out2, ref2, atol=1e-3, rtol=1e-3)

    print("KERNEL_OK")
</pallas_src>

<mosaic_0001>
module attributes {stable_mosaic.version = 11 : i64} {
  func.func @_gated_dense_kernel_fullk(%arg0: i32, %arg1: i32, %arg2: memref<16x128xbf16, #tpu.memory_space<vmem>>, %arg3: memref<128x128xbf16, #tpu.memory_space<vmem>>, %arg4: memref<128x128xbf16, #tpu.memory_space<vmem>>, %arg5: memref<1x128xf32, #tpu.memory_space<vmem>>, %arg6: memref<1x128xf32, #tpu.memory_space<vmem>>, %arg7: memref<16x128xf32, #tpu.memory_space<vmem>>) attributes {dimension_semantics = [#tpu.dimension_semantics<parallel>, #tpu.dimension_semantics<parallel>], iteration_bounds = array<i64: 1, 1>, scalar_prefetch = 0 : i64, scratch_operands = 0 : i64, tpu.core_type = #tpu.core_type<tc>, window_params = [{transform_indices = @transform_0, window_bounds = array<i64: 16, 128>}, {transform_indices = @transform_1, window_bounds = array<i64: 128, 128>}, {transform_indices = @transform_2, window_bounds = array<i64: 128, 128>}, {transform_indices = @transform_3, window_bounds = array<i64: 1, 128>}, {transform_indices = @transform_4, window_bounds = array<i64: 1, 128>}, {transform_indices = @transform_5, window_bounds = array<i64: 16, 128>}]} {
    %c0 = arith.constant 0 : index
    %c0_0 = arith.constant 0 : index
    %0 = vector.load %arg2[%c0, %c0_0] : memref<16x128xbf16, #tpu.memory_space<vmem>>, vector<16x128xbf16>
    %c0_1 = arith.constant 0 : index
    %c0_2 = arith.constant 0 : index
    %1 = vector.load %arg3[%c0_1, %c0_2] : memref<128x128xbf16, #tpu.memory_space<vmem>>, vector<128x128xbf16>
    %cst = arith.constant dense<0.000000e+00> : vector<16x128xf32>
    %2 = tpu.matmul %0, %1, %cst {dimension_numbers = #tpu.dot_dimension_numbers<[1], [0], [0], [1], [0, 0, 1, 1], [], []>} : vector<16x128xbf16>, vector<128x128xbf16>, vector<16x128xf32> -> vector<16x128xf32>
    %c0_3 = arith.constant 0 : index
    %c0_4 = arith.constant 0 : index
    %3 = vector.load %arg5[%c0_3, %c0_4] : memref<1x128xf32, #tpu.memory_space<vmem>>, vector<1x128xf32>
    %4 = vector.broadcast %3 : vector<1x128xf32> to vector<16x128xf32>
    %5 = arith.addf %2, %4 : vector<16x128xf32>
    %c0_5 = arith.constant 0 : index
    %c0_6 = arith.constant 0 : index
    %6 = vector.load %arg4[%c0_5, %c0_6] : memref<128x128xbf16, #tpu.memory_space<vmem>>, vector<128x128xbf16>
    %cst_7 = arith.constant dense<0.000000e+00> : vector<16x128xf32>
    %7 = tpu.matmul %0, %6, %cst_7 {dimension_numbers = #tpu.dot_dimension_numbers<[1], [0], [0], [1], [0, 0, 1, 1], [], []>} : vector<16x128xbf16>, vector<128x128xbf16>, vector<16x128xf32> -> vector<16x128xf32>
    %c0_8 = arith.constant 0 : index
    %c0_9 = arith.constant 0 : index
    %8 = vector.load %arg6[%c0_8, %c0_9] : memref<1x128xf32, #tpu.memory_space<vmem>>, vector<1x128xf32>
    %9 = vector.broadcast %8 : vector<1x128xf32> to vector<16x128xf32>
    %10 = arith.addf %7, %9 : vector<16x128xf32>
    %11 = arith.negf %10 : vector<16x128xf32>
    %12 = math.exp %11 : vector<16x128xf32>
    %cst_10 = arith.constant 1.000000e+00 : f32
    %13 = vector.broadcast %cst_10 : f32 to vector<16x128xf32>
    %14 = arith.addf %13, %12 : vector<16x128xf32>
    %15 = arith.divf %13, %14 : vector<16x128xf32>
    %16 = arith.mulf %5, %15 : vector<16x128xf32>
    %c0_11 = arith.constant 0 : index
    %c0_12 = arith.constant 0 : index
    %17 = vector.load %arg7[%c0_11, %c0_12] : memref<16x128xf32, #tpu.memory_space<vmem>>, vector<16x128xf32>
    tpu.vector_store %arg7[%c0_11, %c0_12], %16 {strides = array<i32>} : memref<16x128xf32, #tpu.memory_space<vmem>>, vector<16x128xf32>,
    return
  }
  func.func @transform_0(%arg0: i32, %arg1: i32) -> (i32, i32) {
    %c0_i32 = arith.constant 0 : i32
    %c0_i32_0 = arith.constant 0 : i32
    return %arg0, %c0_i32 : i32, i32
  }
  func.func @transform_1(%arg0: i32, %arg1: i32) -> (i32, i32) {
    %c0_i32 = arith.constant 0 : i32
    %c0_i32_0 = arith.constant 0 : i32
    return %c0_i32, %arg1 : i32, i32
  }
  func.func @transform_2(%arg0: i32, %arg1: i32) -> (i32, i32) {
    %c0_i32 = arith.constant 0 : i32
    %c0_i32_0 = arith.constant 0 : i32
    return %c0_i32, %arg1 : i32, i32
  }
  func.func @transform_3(%arg0: i32, %arg1: i32) -> (i32, i32) {
    %c0_i32 = arith.constant 0 : i32
    %c0_i32_0 = arith.constant 0 : i32
    return %c0_i32, %arg1 : i32, i32
  }
  func.func @transform_4(%arg0: i32, %arg1: i32) -> (i32, i32) {
    %c0_i32 = arith.constant 0 : i32
    %c0_i32_0 = arith.constant 0 : i32
    return %c0_i32, %arg1 : i32, i32
  }
  func.func @transform_5(%arg0: i32, %arg1: i32) -> (i32, i32) {
    %c0_i32 = arith.constant 0 : i32
    return %arg0, %arg1 : i32, i32
  }
}

</mosaic_0001>

<llo_original>
// kernel: tpu_custom_call.1
$region0: #{tpu_custom_call.1}
  #allocation0 [shape = 'u32[]', space=smem, size = 0x4, offset = 0x4, fixed_abs, tag = 'smem constant byte address 0x4 - core index']
  #allocation1 [shape = 'u32[144,128]{1,0:T(1,128)}', space=vmem, size = 0x12000, scoped, tag = 'internal scratch']
  %s0 = inlined_call_operand.hbm [shape: bf16[16,128], index: 0, kind: input, shape index: {}]
  %s1 = inlined_call_operand.hbm [shape: bf16[128,128], index: 1, kind: input, shape index: {}]
  %s2 = inlined_call_operand.hbm [shape: bf16[128,128], index: 2, kind: input, shape index: {}]
  %s3 = inlined_call_operand.vmem [shape: f32[1,128], index: 3, kind: input, shape index: {}]
  %s4 = inlined_call_operand.vmem [shape: f32[1,128], index: 4, kind: input, shape index: {}]
  %s5 = inlined_call_operand.hbm [shape: f32[16,128], index: 5, kind: output, shape index: {}]
  %s6 = sld [smem:[#allocation0]]
  $region42: #{tpu_custom_call.1} parent=0
    _
  %s8 = ssub.s32 1, %s6
  %s9 = scalar_select 0, %s8, %s6
  $region1: #{tpu_custom_call.1} parent=0
    #allocation2 [shape = 'u8[4096]{0}', space=vmem, size = 0x1000, scoped, tag = 'input window, operand 0, single buffered']
    #allocation3 [shape = 's32[1]{0}', space=sflag, size = 0x4, scoped, tag = 'scoped memory for tpu_custom_call.1']
    #allocation4 [shape = 's32[1]{0}', space=sflag, size = 0x4, scoped, tag = 'scoped memory for tpu_custom_call.1']
    #allocation5 [shape = 'u8[32768]{0}', space=vmem, size = 0x8000, scoped, tag = 'input window, operand 1, single buffered']
    #allocation6 [shape = 's32[1]{0}', space=sflag, size = 0x4, scoped, tag = 'scoped memory for tpu_custom_call.1']
    #allocation7 [shape = 'u8[32768]{0}', space=vmem, size = 0x8000, scoped, tag = 'input window, operand 2, single buffered']
    #allocation8 [shape = 'u8[8192]{0}', space=vmem, size = 0x2000, scoped, tag = 'output window, operand 0, single buffered']
    %10 = vsyncpa [#allocation3], 0
    %11 = vsyncpa [#allocation6], 0
    %12 = vsyncpa [#allocation4], 0
    // Predicated region
    $region2: #{tpu_custom_call.1} parent=1 // pred_check
      _
    $region3: #{tpu_custom_call.1} parent=1 // pred_check_branch
      %14 = sbr.rel (0) target = $region5
    $region4: #{tpu_custom_call.1} parent=1 // pred_region
      %s16 = ssub.s32 128, 128
      %17 = vsyncadd [#allocation3], %s16
      %s18 = sshll.u32 [#allocation2], 4
      %s19 = int_to_ptr.vmem [resolvable:$true] %s18
      %24 = dma.hbm_to_vmem [thread:$0]  %s0, 128, %s19, [#allocation3], 64, 64, 4
    $region5: #{tpu_custom_call.1} parent=1 // pred_fallthru
      _
    // Predicated region
    $region6: #{tpu_custom_call.1} parent=1 // pred_check
      _
    $region7: #{tpu_custom_call.1} parent=1 // pred_check_branch
      %26 = sbr.rel (0) target = $region9
    $region8: #{tpu_custom_call.1} parent=1 // pred_region
      %s28 = ssub.s32 1024, 1024
      %29 = vsyncadd [#allocation6], %s28
      %s30 = sshll.u32 [#allocation5], 4
      %s31 = int_to_ptr.vmem [resolvable:$true] %s30
      %36 = dma.hbm_to_vmem [thread:$0]  %s1, 1024, %s31, [#allocation6], 64, 64, 4
    $region9: #{tpu_custom_call.1} parent=1 // pred_fallthru
      _
    // Predicated region
    $region10: #{tpu_custom_call.1} parent=1 // pred_check
      _
    $region11: #{tpu_custom_call.1} parent=1 // pred_check_branch
      %38 = sbr.rel (0) target = $region13
    $region12: #{tpu_custom_call.1} parent=1 // pred_region
      %s40 = ssub.s32 1024, 1024
      %41 = vsyncadd [#allocation6], %s40
      %s42 = sshll.u32 [#allocation7], 4
      %s43 = int_to_ptr.vmem [resolvable:$true] %s42
      %48 = dma.hbm_to_vmem [thread:$0]  %s2, 1024, %s43, [#allocation6], 64, 64, 4
    $region13: #{tpu_custom_call.1} parent=1 // pred_fallthru
      _
    // Predicated region
    $region14: #{tpu_custom_call.1} parent=1 // pred_check
      _
    $region15: #{tpu_custom_call.1} parent=1 // pred_check_branch
      %50 = sbr.rel (0) target = $region17
    $region16: #{tpu_custom_call.1} parent=1 // pred_region
      _
    $region17: #{tpu_custom_call.1} parent=1 // pred_fallthru
      _
    // Predicated region
    $region18: #{tpu_custom_call.1} parent=1 // pred_check
      _
    $region19: #{tpu_custom_call.1} parent=1 // pred_check_branch
      %52 = sbr.rel (0) target = $region21
    $region20: #{tpu_custom_call.1} parent=1 // pred_region
      _
    $region21: #{tpu_custom_call.1} parent=1 // pred_fallthru
      _
    // Predicated region
    $region22: #{tpu_custom_call.1} parent=1 // pred_check
      _
    $region23: #{tpu_custom_call.1} parent=1 // pred_check_branch
      %54 = sbr.rel (0) target = $region25
    $region24: #{tpu_custom_call.1} parent=1 // pred_region
      %55 = dma.done [#allocation3], 128
    $region25: #{tpu_custom_call.1} parent=1 // pred_fallthru
      _
    // Predicated region
    $region26: #{tpu_custom_call.1} parent=1 // pred_check
      _
    $region27: #{tpu_custom_call.1} parent=1 // pred_check_branch
      %57 = sbr.rel (0) target = $region29
    $region28: #{tpu_custom_call.1} parent=1 // pred_region
      %58 = dma.done [#allocation6], 1024
    $region29: #{tpu_custom_call.1} parent=1 // pred_fallthru
      _
    // Predicated region
    $region30: #{tpu_custom_call.1} parent=1 // pred_check
      _
    $region31: #{tpu_custom_call.1} parent=1 // pred_check_branch
      %60 = sbr.rel (0) target = $region33
    $region32: #{tpu_custom_call.1} parent=1 // pred_region
      %61 = dma.done [#allocation6], 1024
    $region33: #{tpu_custom_call.1} parent=1 // pred_fallthru
      _
    %v63 = vld [vmem:[#allocation2] sm:$0xf]
    %v64 = vld [vmem:[#allocation2 + $0x4] sm:$0xf]
    %v65 = vld [vmem:[#allocation5] sm:$0xf]
    %v66 = vld [vmem:[#allocation5 + $0x4] sm:$0xf]
    %v67 = vld [vmem:[#allocation5 + $0x8] sm:$0xf]
    %v68 = vld [vmem:[#allocation5 + $0xc] sm:$0xf]
    %v69 = vld [vmem:[#allocation5 + $0x10] sm:$0xf]
    %v70 = vld [vmem:[#allocation5 + $0x14] sm:$0xf]
    %v71 = vld [vmem:[#allocation5 + $0x18] sm:$0xf]
    %v72 = vld [vmem:[#allocation5 + $0x1c] sm:$0xf]
    %v73 = vld [vmem:[#allocation5 + $0x20] sm:$0xf]
    %v74 = vld [vmem:[#allocation5 + $0x24] sm:$0xf]
    %v75 = vld [vmem:[#allocation5 + $0x28] sm:$0xf]
    %v76 = vld [vmem:[#allocation5 + $0x2c] sm:$0xf]
    %v77 = vld [vmem:[#allocation5 + $0x30] sm:$0xf]
    %v78 = vld [vmem:[#allocation5 + $0x34] sm:$0xf]
    %v79 = vld [vmem:[#allocation5 + $0x38] sm:$0xf]
    %v80 = vld [vmem:[#allocation5 + $0x3c] sm:$0xf]
    %v81 = vld [vmem:[%s3] sm:$0x1]
    %v83 = vlaneseq
    %v84 = vshrl.u32 %v83, 7
    %v85 = vsub.s32 0, %v84
    %v86 = vrot.slane %v81, %v85
    %v90 = vunpack.c.l.b16 %v63
    %v91 = vunpack.c.l.b16 %v64
    %v92 = vpack.c.b16 %v91, %v90
    %v110 = vunpack.c.l.b16 %v65
    %v111 = vunpack.c.l.b16 %v66
    %v112 = vunpack.c.l.b16 %v67
    %v113 = vunpack.c.l.b16 %v68
    %v114 = vunpack.c.l.b16 %v69
    %v115 = vunpack.c.l.b16 %v70
    %v116 = vunpack.c.l.b16 %v71
    %v117 = vunpack.c.l.b16 %v72
    %v118 = vunpack.c.l.b16 %v73
    %v119 = vunpack.c.l.b16 %v74
    %v120 = vunpack.c.l.b16 %v75
    %v121 = vunpack.c.l.b16 %v76
    %v122 = vunpack.c.l.b16 %v77
    %v123 = vunpack.c.l.b16 %v78
    %v124 = vunpack.c.l.b16 %v79
    %v125 = vunpack.c.l.b16 %v80
    %v126 = vpack.c.b16 %v111, %v110
    %v127 = vpack.c.b16 %v113, %v112
    %v128 = vpack.c.b16 %v115, %v114
    %v129 = vpack.c.b16 %v117, %v116
    %v130 = vpack.c.b16 %v119, %v118
    %v131 = vpack.c.b16 %v121, %v120
    %v132 = vpack.c.b16 %v123, %v122
    %v133 = vpack.c.b16 %v125, %v124
    %142 = vmatprep.subr.bf16.mxu0 0
    %143 = vmatpush1.bf16.msra.mxu0 %v133
    %144 = vmatprep.subr.bf16.mxu0 0
    %145 = vmatpush1.bf16.msra.mxu0 %v132
    %146 = vmatprep.subr.bf16.mxu0 0
    %147 = vmatpush1.bf16.msra.mxu0 %v131
    %148 = vmatprep.subr.bf16.mxu0 0
    %149 = vmatpush1.bf16.msra.mxu0 %v130
    %150 = vmatprep.subr.bf16.mxu0 0
    %151 = vmatpush1.bf16.msra.mxu0 %v129
    %152 = vmatprep.subr.bf16.mxu0 0
    %153 = vmatpush1.bf16.msra.mxu0 %v128
    %154 = vmatprep.subr.bf16.mxu0 0
    %155 = vmatpush1.bf16.msra.mxu0 %v127
    %156 = vmatprep.subr.bf16.mxu0 0
    %157 = vmatpush1.bf16.msra.mxu0 %v126
    %158 = vmatprep.subr.bf16.mxu0 0
    %159 = vmatpush2.bf16.msra.mxu0 0
    %160 = vmatprep.subr.bf16.mxu0 0
    %161 = vmatpush2.bf16.msra.mxu0 0
    %162 = vmatprep.subr.bf16.mxu0 0
    %163 = vmatpush2.bf16.msra.mxu0 0
    %164 = vmatprep.subr.bf16.mxu0 0
    %165 = vmatpush2.bf16.msra.mxu0 0
    %166 = vmatprep.subr.bf16.mxu0 0
    %167 = vmatpush2.bf16.msra.mxu0 0
    %168 = vmatprep.subr.bf16.mxu0 0
    %169 = vmatpush2.bf16.msra.mxu0 0
    %170 = vmatprep.subr.bf16.mxu0 0
    %171 = vmatpush2.bf16.msra.mxu0 0
    %172 = vmatprep.subr.bf16.mxu0 0
    %173 = vmatpush2.bf16.msra.mxu0 0
    %174 = vmatprep.mubr.bf16.mxu0 0
    %175 = vmatmul.mubr.bf16.gmra.mxu0 %v92
    %v176 = vpop.f32.mrf.mxu0
    %v177 = vadd.f32 %v86, %v176
    %v178 = vpop.f32.mrf.mxu0
    %v179 = vpop.f32.mrf.mxu0
    %v180 = vadd.f32 %v86, %v179
    %v181 = vpop.f32.mrf.mxu0
    %182 = vdwg.mxu0
    %v183 = vld [vmem:[#allocation7] sm:$0xf]
    %v184 = vld [vmem:[#allocation7 + $0x4] sm:$0xf]
    %v185 = vld [vmem:[#allocation7 + $0x8] sm:$0xf]
    %v186 = vld [vmem:[#allocation7 + $0xc] sm:$0xf]
    %v187 = vld [vmem:[#allocation7 + $0x10] sm:$0xf]
    %v188 = vld [vmem:[#allocation7 + $0x14] sm:$0xf]
    %v189 = vld [vmem:[#allocation7 + $0x18] sm:$0xf]
    %v190 = vld [vmem:[#allocation7 + $0x1c] sm:$0xf]
    %v191 = vld [vmem:[#allocation7 + $0x20] sm:$0xf]
    %v192 = vld [vmem:[#allocation7 + $0x24] sm:$0xf]
    %v193 = vld [vmem:[#allocation7 + $0x28] sm:$0xf]
    %v194 = vld [vmem:[#allocation7 + $0x2c] sm:$0xf]
    %v195 = vld [vmem:[#allocation7 + $0x30] sm:$0xf]
    %v196 = vld [vmem:[#allocation7 + $0x34] sm:$0xf]
    %v197 = vld [vmem:[#allocation7 + $0x38] sm:$0xf]
    %v198 = vld [vmem:[#allocation7 + $0x3c] sm:$0xf]
    %v199 = vld [vmem:[%s4] sm:$0x1]
    %v201 = vlaneseq
    %v202 = vshrl.u32 %v201, 7
    %v203 = vsub.s32 0, %v202
    %v204 = vrot.slane %v199, %v203
    %v222 = vunpack.c.l.b16 %v183
    %v223 = vunpack.c.l.b16 %v184
    %v224 = vunpack.c.l.b16 %v185
    %v225 = vunpack.c.l.b16 %v186
    %v226 = vunpack.c.l.b16 %v187
    %v227 = vunpack.c.l.b16 %v188
    %v228 = vunpack.c.l.b16 %v189
    %v229 = vunpack.c.l.b16 %v190
    %v230 = vunpack.c.l.b16 %v191
    %v231 = vunpack.c.l.b16 %v192
    %v232 = vunpack.c.l.b16 %v193
    %v233 = vunpack.c.l.b16 %v194
    %v234 = vunpack.c.l.b16 %v195
    %v235 = vunpack.c.l.b16 %v196
    %v236 = vunpack.c.l.b16 %v197
    %v237 = vunpack.c.l.b16 %v198
    %v238 = vpack.c.b16 %v223, %v222
    %v239 = vpack.c.b16 %v225, %v224
    %v240 = vpack.c.b16 %v227, %v226
    %v241 = vpack.c.b16 %v229, %v228
    %v242 = vpack.c.b16 %v231, %v230
    %v243 = vpack.c.b16 %v233, %v232
    %v244 = vpack.c.b16 %v235, %v234
    %v245 = vpack.c.b16 %v237, %v236
    %254 = vmatprep.subr.bf16.mxu0 0
    %255 = vmatpush1.bf16.msra.mxu0 %v245
    %256 = vmatprep.subr.bf16.mxu0 0
    %257 = vmatpush1.bf16.msra.mxu0 %v244
    %258 = vmatprep.subr.bf16.mxu0 0
    %259 = vmatpush1.bf16.msra.mxu0 %v243
    %260 = vmatprep.subr.bf16.mxu0 0
    %261 = vmatpush1.bf16.msra.mxu0 %v242
    %262 = vmatprep.subr.bf16.mxu0 0
    %263 = vmatpush1.bf16.msra.mxu0 %v241
    %264 = vmatprep.subr.bf16.mxu0 0
    %265 = vmatpush1.bf16.msra.mxu0 %v240
    %266 = vmatprep.subr.bf16.mxu0 0
    %267 = vmatpush1.bf16.msra.mxu0 %v239
    %268 = vmatprep.subr.bf16.mxu0 0
    %269 = vmatpush1.bf16.msra.mxu0 %v238
    %270 = vmatprep.subr.bf16.mxu0 0
    %271 = vmatpush2.bf16.msra.mxu0 0
    %272 = vmatprep.subr.bf16.mxu0 0
    %273 = vmatpush2.bf16.msra.mxu0 0
    %274 = vmatprep.subr.bf16.mxu0 0
    %275 = vmatpush2.bf16.msra.mxu0 0
    %276 = vmatprep.subr.bf16.mxu0 0
    %277 = vmatpush2.bf16.msra.mxu0 0
    %278 = vmatprep.subr.bf16.mxu0 0
    %279 = vmatpush2.bf16.msra.mxu0 0
    %280 = vmatprep.subr.bf16.mxu0 0
    %281 = vmatpush2.bf16.msra.mxu0 0
    %282 = vmatprep.subr.bf16.mxu0 0
    %283 = vmatpush2.bf16.msra.mxu0 0
    %284 = vmatprep.subr.bf16.mxu0 0
    %285 = vmatpush2.bf16.msra.mxu0 0
    %286 = vmatprep.mubr.bf16.mxu0 0
    %287 = vmatmul.mubr.bf16.gmra.mxu0 %v92
    %v288 = vpop.f32.mrf.mxu0
    %v289 = vadd.f32 %v204, %v288
    %v290 = vpop.f32.mrf.mxu0
    %v291 = vpop.f32.mrf.mxu0
    %v292 = vadd.f32 %v204, %v291
    %v293 = vpop.f32.mrf.mxu0
    %294 = vdwg.mxu0
    %v295 = vxor.u32 %v289, 2147483648
    %v296 = vxor.u32 %v292, 2147483648
    %v297 = vmul.f32 %v295, 1.442695
    %v298 = vpow.pop %v297
    %v299 = vmul.f32 %v296, 1.442695
    %v300 = vpow.pop %v299
    %v301 = vadd.f32 %v298, 1.0
    %v302 = vadd.f32 %v300, 1.0
    %v303 = vrcp.pop %v301
    %v304 = vmul.f32 1.0, %v303
    %v305 = vrcp.pop %v302
    %v306 = vmul.f32 1.0, %v305
    %v307 = vmul.f32 %v177, %v304
    %v308 = vmul.f32 %v180, %v306
    %309 = vst [vmem:[#allocation8] sm:$0xff] %v307
    %310 = vst [vmem:[#allocation8 + $0x8] sm:$0xff] %v308
    // Predicated region
    $region34: #{tpu_custom_call.1} parent=1 // pred_check
      _
    $region35: #{tpu_custom_call.1} parent=1 // pred_check_branch
      %312 = sbr.rel (0) target = $region37
    $region36: #{tpu_custom_call.1} parent=1 // pred_region
      %s314 = ssub.s32 256, 256
      %315 = vsyncadd [#allocation4], %s314
      %s316 = sshll.u32 [#allocation8], 4
      %s317 = int_to_ptr.vmem [resolvable:$true] %s316
      %322 = dma.vmem_to_hbm [thread:$0]  %s317, 256, %s5, [#allocation4], 128, 128, 8
    $region37: #{tpu_custom_call.1} parent=1 // pred_fallthru
      _
    // Predicated region
    $region38: #{tpu_custom_call.1} parent=1 // pred_check
      _
    $region39: #{tpu_custom_call.1} parent=1 // pred_check_branch
      %324 = sbr.rel (0) target = $region41
    $region40: #{tpu_custom_call.1} parent=1 // pred_region
      %325 = dma.done [#allocation4], 256
    $region41: #{tpu_custom_call.1} parent=1 // pred_fallthru
      _
    %326 = vsyncpa [#allocation3], 1
    %327 = vsyncpa [#allocation6], 1
    %328 = vsyncpa [#allocation4], 1

</llo_original>
